<compile_context>
chip_gen: v5e
topology: v5e:2x2
jax: 0.10.0
libtpu: 0.0.40
codegen_flags: <defaults>
</compile_context>

<pallas_src>
import functools

import jax
import jax.numpy as jnp
from jax.experimental import pallas as pl
from jax.experimental.pallas import tpu as pltpu

LANE = 128        # TPU lane width (last dim)
ROW_TILE = 32     # batch-row multiple: int8 native sublane tile (also mult. of bf16's 16)
MAX_TILE_B = 256  # per-grid-step batch tile; >=256 keeps the MXU M-dim busy on v6e/v7x


def _round_up(x, m):
    return (x + m - 1) // m * m


# ----------------------------- quant helpers --------------------------------

def quant_weight(w, bw):
    """CommonWeightQuant: scaling_const=1.0, signed, narrow-range (build time)."""
    if bw == 1:
        return jnp.where(w >= 0.0, 1.0, -1.0).astype(w.dtype)
    n = float(2 ** (bw - 1) - 1)
    # TODO(synk): for weight_bw>1 the values k/n are bf16-rounded when stored.
    return jnp.round(jnp.clip(w, -1.0, 1.0) * n) / n


def _act_quant_bf16(y, bw):
    """CommonActQuant on an f32 tile, emitted directly as bf16."""
    if bw == 1:
        # Brevitas binary convention: 0 maps to +1.  Exact in bf16.
        return jnp.where(y >= 0.0, 1.0, -1.0).astype(jnp.bfloat16)
    n = float(2 ** (bw - 1) - 1)
    # TODO(synk): for act_bw>1, k/n is not exactly representable in bf16.
    return (jnp.round(jnp.clip(y, -1.0, 1.0) * n) / n).astype(jnp.bfloat16)


def _quantize_input_codes(x_flat, in_bw):
    """Wrapper-side input prep: x -> 2*x-1 -> CommonActQuant(in_bw).

    For in_bw <= 8 returns integer codes k as int8 (4x fewer HBM bytes); the
    1/n factor is folded into layer-0's scale at build time, so the kernel's
    first matmul runs on exact integers.
    """
    y = 2.0 * x_flat - 1.0
    if in_bw == 1:
        return jnp.where(y >= 0.0, 1, -1).astype(jnp.int8)
    n = float(2 ** (in_bw - 1) - 1)
    q = jnp.round(jnp.clip(y, -1.0, 1.0) * n)
    if in_bw <= 8:
        return q.astype(jnp.int8)
    # TODO(synk): in_bw > 8 falls back to bf16-rounded real values (not exact).
    return (q / n).astype(jnp.bfloat16)


# ------------------------------- fused kernel --------------------------------

def _fc_fused_kernel(*refs, num_layers, act_bw, out_widths):
    """refs = (x_ref, w_ref * num_layers, scale_shift_ref, o_ref).

    One batch tile flows through the whole MLP; activations never leave
    VMEM/vregs.  Dropout is eval-mode identity.
    # TODO(synk): stochastic (training-mode) dropout not implemented.
    """
    x_ref = refs[0]
    w_refs = refs[1:1 + num_layers]
    sb_ref = refs[1 + num_layers]
    o_ref = refs[2 + num_layers]

    sb = sb_ref[...]                         # (L, 2, N_max) f32, tiny, read once
    x = x_ref[...].astype(jnp.bfloat16)      # int8 codes -> bf16 (integers exact)

    for l in range(num_layers):
        n_l = out_widths[l]
        # bf16 operands, f32 MXU accumulation.
        y = jnp.dot(x, w_refs[l][...], preferred_element_type=jnp.float32)
        # Folded BatchNorm1d / TensorNorm affine (f32).  Layer 0's scale also
        # carries the 1/n input-quant factor.
        y = y * sb[l, 0:1, :n_l] + sb[l, 1:2, :n_l]
        if l == num_layers - 1:
            o_ref[...] = y.astype(o_ref.dtype)       # final layer: no act quant
        else:
            x = _act_quant_bf16(y, act_bw)           # QuantIdentity(act_bw) -> bf16


# ------------------------------ wrapper ---------------------------------------

def _fc_forward_fused(codes, params):
    """Single pallas_call over a batch grid; weights stay VMEM-resident."""
    B, F = codes.shape
    weights = params["weights"]
    sb = params["scale_shift"]              # (L, 2, N_max) f32
    out_widths = params["out_widths"]       # padded per-layer output widths
    num_layers = len(weights)
    K0_pad = weights[0].shape[0]
    N_out_pad = weights[-1].shape[1]
    assert F <= K0_pad

    tile_b = min(_round_up(B, ROW_TILE), MAX_TILE_B)
    B_pad = _round_up(B, tile_b)
    grid = (B_pad // tile_b,)

    # Zero-pad batch rows / feature columns (padded weight rows are zero, so
    # padded features contribute nothing).
    x_pad = jnp.zeros((B_pad, K0_pad), codes.dtype).at[:B, :F].set(codes)

    inputs = [x_pad]
    in_specs = [pl.BlockSpec((tile_b, K0_pad), lambda i: (i, 0))]
    flops = 0
    bytes_accessed = int(x_pad.size) * x_pad.dtype.itemsize + B_pad * N_out_pad * 2
    weight_bytes = 0
    for w in weights:
        inputs.append(w)
        # Constant index_map -> block is grid-invariant and stays resident.
        in_specs.append(pl.BlockSpec(w.shape, lambda i: (0, 0)))
        flops += 2 * B_pad * w.shape[0] * w.shape[1]
        weight_bytes += int(w.size) * w.dtype.itemsize
    bytes_accessed += weight_bytes
    inputs.append(sb)
    in_specs.append(pl.BlockSpec(sb.shape, lambda i: (0, 0, 0)))
    bytes_accessed += int(sb.size) * 4

    # Explicit VMEM budget: resident weights + affines (x2 headroom for
    # buffering) + double-buffered x/out tiles + activation working set.
    max_n = max(out_widths)
    vmem_bytes = (2 * weight_bytes + 2 * int(sb.size) * 4
                  + 2 * tile_b * K0_pad * x_pad.dtype.itemsize
                  + 2 * tile_b * N_out_pad * 2
                  + 2 * tile_b * max_n * 4
                  + (2 << 20))
    vmem_limit = int(min(max(vmem_bytes, 4 << 20), 64 << 20))

    kernel = functools.partial(
        _fc_fused_kernel, num_layers=num_layers,
        act_bw=params["act_bw"], out_widths=tuple(out_widths))

    out = pl.pallas_call(
        kernel,
        out_shape=jax.ShapeDtypeStruct((B_pad, N_out_pad), jnp.bfloat16),
        grid=grid,
        in_specs=in_specs,
        out_specs=pl.BlockSpec((tile_b, N_out_pad), lambda i: (i, 0)),
        cost_estimate=pl.CostEstimate(
            flops=int(flops), transcendentals=0,
            bytes_accessed=int(bytes_accessed)),
        compiler_params=pltpu.CompilerParams(
            dimension_semantics=("parallel",),   # batch axis: megacore on v7x
            vmem_limit_bytes=vmem_limit),
    )(*inputs)
    return out


def fc_forward(x, params):
    """Eval-mode forward matching FC.forward (dropout = identity)."""
    B = x.shape[0]
    x_flat = x.reshape(B, -1).astype(jnp.float32)          # x.view(B, -1)
    codes = _quantize_input_codes(x_flat, params["in_bw"])  # 2x-1 + input quant
    out_pad = _fc_forward_fused(codes, params)
    return out_pad[:B, :params["num_classes"]].astype(jnp.float32)


# --------------------------- parameter construction ---------------------------

def build_fc_params(key, in_features, hidden_features, num_classes, *,
                    weight_bw, act_bw, in_bw):
    """Init matching FC.__init__ (eval-mode buffers): pre-quantize weights,
    fold BN/TensorNorm (and the input 1/n factor) into per-channel affines,
    zero-pad everything lane-dense, and pack the affines into one operand."""
    bn_eps = 1e-5
    tn_eps = 1e-4
    weights, scales, shifts, out_widths = [], [], [], []

    k_in = in_features
    layer_dims = list(hidden_features) + [num_classes]
    for li, h in enumerate(layer_dims):
        is_last = (li == len(layer_dims) - 1)
        key, kw = jax.random.split(key)
        # torch.nn.init.uniform_(weight, -1, 1); torch is [out,in] -> store [in,out].
        w = jax.random.uniform(kw, (k_in, h), jnp.float32, minval=-1.0, maxval=1.0)
        wq = quant_weight(w, weight_bw)

        if is_last:
            # TensorNorm: scalar weight/bias ~ U[0,1); running_mean=0, running_var=1.
            key, kt = jax.random.split(key)
            tn_w, tn_b = jax.random.uniform(kt, (2,), jnp.float32)
            scale = jnp.full((h,), tn_w / jnp.sqrt(1.0 + tn_eps), jnp.float32)
            shift = jnp.full((h,), tn_b, jnp.float32)
        else:
            # BatchNorm1d eval-mode defaults: gamma=1, beta=0, rm=0, rv=1.
            gamma = jnp.ones((h,), jnp.float32)
            beta = jnp.zeros((h,), jnp.float32)
            rm = jnp.zeros((h,), jnp.float32)
            rv = jnp.ones((h,), jnp.float32)
            scale = gamma / jnp.sqrt(rv + bn_eps)
            shift = beta - rm * scale
        if li == 0 and 1 < in_bw <= 8:
            # Input streamed as integer codes k; fold 1/n into layer-0 scale.
            scale = scale / float(2 ** (in_bw - 1) - 1)

        K_pad, N_pad = _round_up(k_in, LANE), _round_up(h, LANE)
        w_pad = jnp.zeros((K_pad, N_pad), jnp.bfloat16).at[:k_in, :h].set(
            wq.astype(jnp.bfloat16))
        # Padded hidden lanes quantize 0 -> +1; correctness requires the NEXT
        # layer's padded weight ROWS (and padded shift entries) to be exactly 0.
        assert k_in == K_pad or bool(jnp.all(w_pad[k_in:, :] == 0))
        assert h == N_pad or bool(jnp.all(w_pad[:, h:] == 0))
        s_pad = jnp.zeros((N_pad,), jnp.float32).at[:h].set(scale)
        b_pad = jnp.zeros((N_pad,), jnp.float32).at[:h].set(shift)
        assert h == N_pad or bool(jnp.all(b_pad[h:] == 0))

        weights.append(w_pad)
        scales.append(s_pad)
        shifts.append(b_pad)
        out_widths.append(N_pad)
        k_in = h

    # Pack all per-layer affines into one (L, 2, N_max) f32 operand.
    n_max = max(out_widths)
    L = len(weights)
    sb = jnp.zeros((L, 2, n_max), jnp.float32)
    for l in range(L):
        sb = sb.at[l, 0, :out_widths[l]].set(scales[l])
        sb = sb.at[l, 1, :out_widths[l]].set(shifts[l])

    return {"weights": weights, "scale_shift": sb, "out_widths": out_widths,
            "num_classes": num_classes, "in_bw": in_bw, "act_bw": act_bw}


# ---------------------------------- main ---------------------------------------

if __name__ == "__main__":
    num_classes = 10
    weight_bit_width = 1
    act_bit_width = 1
    in_bit_width = 8
    hidden_features = (64, 64)
    in_hw = (16, 16)                       # flatten -> 256 features
    batch = 4

    key = jax.random.PRNGKey(0)
    key, kx, kp = jax.random.split(key, 3)
    x = jax.random.uniform(kx, (batch, 1, *in_hw), jnp.float32)   # pixels in [0,1)

    params = build_fc_params(kp, in_hw[0] * in_hw[1], hidden_features, num_classes,
                             weight_bw=weight_bit_width, act_bw=act_bit_width,
                             in_bw=in_bit_width)

    out = fc_forward(x, params)
    out = jax.block_until_ready(out)
    assert out.shape == (batch, num_classes)
    assert bool(jnp.all(jnp.isfinite(out)))
    print("KERNEL_OK")
</pallas_src>

<mosaic_0001>
module attributes {stable_mosaic.version = 11 : i64} {
  func.func @_fc_fused_kernel(%arg0: i32, %arg1: memref<32x256xi8, #tpu.memory_space<vmem>>, %arg2: memref<256x128xbf16, #tpu.memory_space<vmem>>, %arg3: memref<128x128xbf16, #tpu.memory_space<vmem>>, %arg4: memref<128x128xbf16, #tpu.memory_space<vmem>>, %arg5: memref<3x2x128xf32, #tpu.memory_space<vmem>>, %arg6: memref<32x128xbf16, #tpu.memory_space<vmem>>) attributes {dimension_semantics = [#tpu.dimension_semantics<parallel>], iteration_bounds = array<i64: 1>, scalar_prefetch = 0 : i64, scratch_operands = 0 : i64, tpu.core_type = #tpu.core_type<tc>, window_params = [{transform_indices = @transform_0, window_bounds = array<i64: 32, 256>}, {pipeline_mode = #tpu.pipeline_mode<synchronous>, transform_indices = @transform_1, window_bounds = array<i64: 256, 128>}, {pipeline_mode = #tpu.pipeline_mode<synchronous>, transform_indices = @transform_2, window_bounds = array<i64: 128, 128>}, {pipeline_mode = #tpu.pipeline_mode<synchronous>, transform_indices = @transform_3, window_bounds = array<i64: 128, 128>}, {pipeline_mode = #tpu.pipeline_mode<synchronous>, transform_indices = @transform_4, window_bounds = array<i64: 3, 2, 128>}, {transform_indices = @transform_5, window_bounds = array<i64: 32, 128>}]} {
    %c0 = arith.constant 0 : index
    %c0_0 = arith.constant 0 : index
    %c0_1 = arith.constant 0 : index
    %0 = vector.load %arg5[%c0, %c0_0, %c0_1] : memref<3x2x128xf32, #tpu.memory_space<vmem>>, vector<3x2x128xf32>
    %c0_2 = arith.constant 0 : index
    %c0_3 = arith.constant 0 : index
    %1 = vector.load %arg1[%c0_2, %c0_3] : memref<32x256xi8, #tpu.memory_space<vmem>>, vector<32x256xi8>
    %2 = arith.sitofp %1 : vector<32x256xi8> to vector<32x256xbf16>
    %c0_4 = arith.constant 0 : index
    %c0_5 = arith.constant 0 : index
    %3 = vector.load %arg2[%c0_4, %c0_5] : memref<256x128xbf16, #tpu.memory_space<vmem>>, vector<256x128xbf16>
    %cst = arith.constant dense<0.000000e+00> : vector<32x128xf32>
    %4 = tpu.matmul %2, %3, %cst {dimension_numbers = #tpu.dot_dimension_numbers<[1], [0], [0], [1], [0, 0, 1, 1], [], []>} : vector<32x256xbf16>, vector<256x128xbf16>, vector<32x128xf32> -> vector<32x128xf32>
    %5 = vector.extract_strided_slice %0 {offsets = [0, 0, 0], sizes = [1, 1, 128], strides = [1, 1, 1]} : vector<3x2x128xf32> to vector<1x1x128xf32>
    %6 = vector.shape_cast %5 : vector<1x1x128xf32> to vector<1x128xf32>
    %7 = vector.broadcast %6 : vector<1x128xf32> to vector<32x128xf32>
    %8 = arith.mulf %4, %7 : vector<32x128xf32>
    %9 = vector.extract_strided_slice %0 {offsets = [0, 1, 0], sizes = [1, 1, 128], strides = [1, 1, 1]} : vector<3x2x128xf32> to vector<1x1x128xf32>
    %10 = vector.shape_cast %9 : vector<1x1x128xf32> to vector<1x128xf32>
    %11 = vector.broadcast %10 : vector<1x128xf32> to vector<32x128xf32>
    %12 = arith.addf %8, %11 : vector<32x128xf32>
    %cst_6 = arith.constant 0.000000e+00 : f32
    %13 = vector.broadcast %cst_6 : f32 to vector<32x128xf32>
    %14 = arith.cmpf oge, %12, %13 : vector<32x128xf32>
    %cst_7 = arith.constant 1.000000e+00 : f32
    %cst_8 = arith.constant -1.000000e+00 : f32
    %15 = vector.broadcast %cst_7 : f32 to vector<32x128xf32>
    %16 = vector.broadcast %cst_8 : f32 to vector<32x128xf32>
    %17 = arith.select %14, %15, %16 : vector<32x128xi1>, vector<32x128xf32>
    %18 = arith.truncf %17 : vector<32x128xf32> to vector<32x128xbf16>
    %c0_9 = arith.constant 0 : index
    %c0_10 = arith.constant 0 : index
    %19 = vector.load %arg3[%c0_9, %c0_10] : memref<128x128xbf16, #tpu.memory_space<vmem>>, vector<128x128xbf16>
    %cst_11 = arith.constant dense<0.000000e+00> : vector<32x128xf32>
    %20 = tpu.matmul %18, %19, %cst_11 {dimension_numbers = #tpu.dot_dimension_numbers<[1], [0], [0], [1], [0, 0, 1, 1], [], []>} : vector<32x128xbf16>, vector<128x128xbf16>, vector<32x128xf32> -> vector<32x128xf32>
    %21 = vector.extract_strided_slice %0 {offsets = [1, 0, 0], sizes = [1, 1, 128], strides = [1, 1, 1]} : vector<3x2x128xf32> to vector<1x1x128xf32>
    %22 = vector.shape_cast %21 : vector<1x1x128xf32> to vector<1x128xf32>
    %23 = vector.broadcast %22 : vector<1x128xf32> to vector<32x128xf32>
    %24 = arith.mulf %20, %23 : vector<32x128xf32>
    %25 = vector.extract_strided_slice %0 {offsets = [1, 1, 0], sizes = [1, 1, 128], strides = [1, 1, 1]} : vector<3x2x128xf32> to vector<1x1x128xf32>
    %26 = vector.shape_cast %25 : vector<1x1x128xf32> to vector<1x128xf32>
    %27 = vector.broadcast %26 : vector<1x128xf32> to vector<32x128xf32>
    %28 = arith.addf %24, %27 : vector<32x128xf32>
    %cst_12 = arith.constant 0.000000e+00 : f32
    %29 = vector.broadcast %cst_12 : f32 to vector<32x128xf32>
    %30 = arith.cmpf oge, %28, %29 : vector<32x128xf32>
    %cst_13 = arith.constant 1.000000e+00 : f32
    %cst_14 = arith.constant -1.000000e+00 : f32
    %31 = vector.broadcast %cst_13 : f32 to vector<32x128xf32>
    %32 = vector.broadcast %cst_14 : f32 to vector<32x128xf32>
    %33 = arith.select %30, %31, %32 : vector<32x128xi1>, vector<32x128xf32>
    %34 = arith.truncf %33 : vector<32x128xf32> to vector<32x128xbf16>
    %c0_15 = arith.constant 0 : index
    %c0_16 = arith.constant 0 : index
    %35 = vector.load %arg4[%c0_15, %c0_16] : memref<128x128xbf16, #tpu.memory_space<vmem>>, vector<128x128xbf16>
    %cst_17 = arith.constant dense<0.000000e+00> : vector<32x128xf32>
    %36 = tpu.matmul %34, %35, %cst_17 {dimension_numbers = #tpu.dot_dimension_numbers<[1], [0], [0], [1], [0, 0, 1, 1], [], []>} : vector<32x128xbf16>, vector<128x128xbf16>, vector<32x128xf32> -> vector<32x128xf32>
    %37 = vector.extract_strided_slice %0 {offsets = [2, 0, 0], sizes = [1, 1, 128], strides = [1, 1, 1]} : vector<3x2x128xf32> to vector<1x1x128xf32>
    %38 = vector.shape_cast %37 : vector<1x1x128xf32> to vector<1x128xf32>
    %39 = vector.broadcast %38 : vector<1x128xf32> to vector<32x128xf32>
    %40 = arith.mulf %36, %39 : vector<32x128xf32>
    %41 = vector.extract_strided_slice %0 {offsets = [2, 1, 0], sizes = [1, 1, 128], strides = [1, 1, 1]} : vector<3x2x128xf32> to vector<1x1x128xf32>
    %42 = vector.shape_cast %41 : vector<1x1x128xf32> to vector<1x128xf32>
    %43 = vector.broadcast %42 : vector<1x128xf32> to vector<32x128xf32>
    %44 = arith.addf %40, %43 : vector<32x128xf32>
    %45 = arith.truncf %44 : vector<32x128xf32> to vector<32x128xbf16>
    %c0_18 = arith.constant 0 : index
    %c0_19 = arith.constant 0 : index
    %46 = vector.load %arg6[%c0_18, %c0_19] : memref<32x128xbf16, #tpu.memory_space<vmem>>, vector<32x128xbf16>
    tpu.vector_store %arg6[%c0_18, %c0_19], %45 {strides = array<i32>} : memref<32x128xbf16, #tpu.memory_space<vmem>>, vector<32x128xbf16>,
    return
  }
  func.func @transform_0(%arg0: i32) -> (i32, i32) {
    %c0_i32 = arith.constant 0 : i32
    %c0_i32_0 = arith.constant 0 : i32
    return %arg0, %c0_i32 : i32, i32
  }
  func.func @transform_1(%arg0: i32) -> (i32, i32) {
    %c0_i32 = arith.constant 0 : i32
    %c0_i32_0 = arith.constant 0 : i32
    %c0_i32_1 = arith.constant 0 : i32
    return %c0_i32, %c0_i32_0 : i32, i32
  }
  func.func @transform_2(%arg0: i32) -> (i32, i32) {
    %c0_i32 = arith.constant 0 : i32
    %c0_i32_0 = arith.constant 0 : i32
    %c0_i32_1 = arith.constant 0 : i32
    return %c0_i32, %c0_i32_0 : i32, i32
  }
  func.func @transform_3(%arg0: i32) -> (i32, i32) {
    %c0_i32 = arith.constant 0 : i32
    %c0_i32_0 = arith.constant 0 : i32
    %c0_i32_1 = arith.constant 0 : i32
    return %c0_i32, %c0_i32_0 : i32, i32
  }
  func.func @transform_4(%arg0: i32) -> (i32, i32, i32) {
    %c0_i32 = arith.constant 0 : i32
    %c0_i32_0 = arith.constant 0 : i32
    %c0_i32_1 = arith.constant 0 : i32
    %c0_i32_2 = arith.constant 0 : i32
    return %c0_i32, %c0_i32_0, %c0_i32_1 : i32, i32, i32
  }
  func.func @transform_5(%arg0: i32) -> (i32, i32) {
    %c0_i32 = arith.constant 0 : i32
    %c0_i32_0 = arith.constant 0 : i32
    return %arg0, %c0_i32 : i32, i32
  }
}

</mosaic_0001>

<llo_original>
// kernel: tpu_custom_call.1
$region0: #{tpu_custom_call.1}
  #allocation0 [shape = 'u32[]', space=smem, size = 0x4, offset = 0x4, fixed_abs, tag = 'smem constant byte address 0x4 - core index']
  #allocation1 [shape = 'u32[72,128]{1,0:T(1,128)}', space=vmem, size = 0x9000, scoped, tag = 'internal scratch']
  %s0 = inlined_call_operand.hbm [shape: s8[32,256], index: 0, kind: input, shape index: {}]
  %s1 = inlined_call_operand.hbm [shape: bf16[256,128], index: 1, kind: input, shape index: {}]
  %s2 = inlined_call_operand.hbm [shape: bf16[128,128], index: 2, kind: input, shape index: {}]
  %s3 = inlined_call_operand.hbm [shape: bf16[128,128], index: 3, kind: input, shape index: {}]
  %s4 = inlined_call_operand.hbm [shape: f32[3,2,128], index: 4, kind: input, shape index: {}]
  %s5 = inlined_call_operand.hbm [shape: bf16[32,128], index: 5, kind: output, shape index: {}]
  %s6 = sld [smem:[#allocation0]]
  $region50: #{tpu_custom_call.1} parent=0
    _
  %s8 = ssub.s32 1, %s6
  %s9 = scalar_select 0, %s8, %s6
  $region1: #{tpu_custom_call.1} parent=0
    #allocation2 [shape = 'u8[8192]{0}', space=vmem, size = 0x2000, scoped, tag = 'input window, operand 0, single buffered']
    #allocation3 [shape = 's32[1]{0}', space=sflag, size = 0x4, scoped, tag = 'scoped memory for tpu_custom_call.1']
    #allocation4 [shape = 's32[1]{0}', space=sflag, size = 0x4, scoped, tag = 'scoped memory for tpu_custom_call.1']
    #allocation5 [shape = 'u8[65536]{0}', space=vmem, size = 0x10000, scoped, tag = 'input window, operand 1, single buffered']
    #allocation6 [shape = 's32[1]{0}', space=sflag, size = 0x4, scoped, tag = 'scoped memory for tpu_custom_call.1']
    #allocation7 [shape = 'u8[32768]{0}', space=vmem, size = 0x8000, scoped, tag = 'input window, operand 2, single buffered']
    #allocation8 [shape = 'u8[32768]{0}', space=vmem, size = 0x8000, scoped, tag = 'input window, operand 3, single buffered']
    #allocation9 [shape = 's32[1]{0}', space=sflag, size = 0x4, scoped, tag = 'scoped memory for tpu_custom_call.1']
    #allocation10 [shape = 'u8[3072]{0}', space=vmem, size = 0xc00, scoped, tag = 'input window, operand 4, single buffered']
    #allocation11 [shape = 'u8[8192]{0}', space=vmem, size = 0x2000, scoped, tag = 'output window, operand 0, single buffered']
    %10 = vsyncpa [#allocation3], 0
    %11 = vsyncpa [#allocation6], 0
    %12 = vsyncpa [#allocation9], 0
    %13 = vsyncpa [#allocation4], 0
    // Predicated region
    $region2: #{tpu_custom_call.1} parent=1 // pred_check
      _
    $region3: #{tpu_custom_call.1} parent=1 // pred_check_branch
      %15 = sbr.rel (0) target = $region5
    $region4: #{tpu_custom_call.1} parent=1 // pred_region
      %17 = vsyncadd [#allocation3], 0
      %s19 = sshll.u32 %s0, 4
      %s20 = int_to_ptr.hbm [resolvable:$true] %s19
      %s21 = sshll.u32 [#allocation2], 4
      %s22 = int_to_ptr.vmem [resolvable:$true] %s21
      %24 = dma.hbm_to_vmem [thread:$0]  %s20, 256, %s22, [#allocation3]
    $region5: #{tpu_custom_call.1} parent=1 // pred_fallthru
      _
    // Predicated region
    $region6: #{tpu_custom_call.1} parent=1 // pred_check
      _
    $region7: #{tpu_custom_call.1} parent=1 // pred_check_branch
      %26 = sbr.rel (0) target = $region9
    $region8: #{tpu_custom_call.1} parent=1 // pred_region
      %28 = vsyncadd [#allocation6], 0
      %s29 = sshll.u32 %s1, 4
      %s30 = int_to_ptr.hbm [resolvable:$true] %s29
      %s31 = sshll.u32 [#allocation5], 4
      %s32 = int_to_ptr.vmem [resolvable:$true] %s31
      %37 = dma.hbm_to_vmem [thread:$0]  %s30, 2048, %s32, [#allocation6], 64, 64, 4
    $region9: #{tpu_custom_call.1} parent=1 // pred_fallthru
      _
    // Predicated region
    $region10: #{tpu_custom_call.1} parent=1 // pred_check
      _
    $region11: #{tpu_custom_call.1} parent=1 // pred_check_branch
      %39 = sbr.rel (0) target = $region13
    $region12: #{tpu_custom_call.1} parent=1 // pred_region
      %41 = vsyncadd [#allocation6], 0
      %s42 = sshll.u32 %s2, 4
      %s43 = int_to_ptr.hbm [resolvable:$true] %s42
      %s44 = sshll.u32 [#allocation7], 4
      %s45 = int_to_ptr.vmem [resolvable:$true] %s44
      %50 = dma.hbm_to_vmem [thread:$0]  %s43, 1024, %s45, [#allocation6], 64, 64, 4
    $region13: #{tpu_custom_call.1} parent=1 // pred_fallthru
      _
    // Predicated region
    $region14: #{tpu_custom_call.1} parent=1 // pred_check
      _
    $region15: #{tpu_custom_call.1} parent=1 // pred_check_branch
      %52 = sbr.rel (0) target = $region17
    $region16: #{tpu_custom_call.1} parent=1 // pred_region
      %54 = vsyncadd [#allocation9], 0
      %s55 = sshll.u32 %s3, 4
      %s56 = int_to_ptr.hbm [resolvable:$true] %s55
      %s57 = sshll.u32 [#allocation8], 4
      %s58 = int_to_ptr.vmem [resolvable:$true] %s57
      %63 = dma.hbm_to_vmem [thread:$0]  %s56, 1024, %s58, [#allocation9], 64, 64, 4
    $region17: #{tpu_custom_call.1} parent=1 // pred_fallthru
      _
    // Predicated region
    $region18: #{tpu_custom_call.1} parent=1 // pred_check
      _
    $region19: #{tpu_custom_call.1} parent=1 // pred_check_branch
      %65 = sbr.rel (0) target = $region21
    $region20: #{tpu_custom_call.1} parent=1 // pred_region
      %67 = vsyncadd [#allocation9], 0
      %s68 = sshll.u32 %s4, 4
      %s69 = int_to_ptr.hbm [resolvable:$true] %s68
      %s70 = sshll.u32 [#allocation10], 4
      %s71 = int_to_ptr.vmem [resolvable:$true] %s70
      %76 = dma.hbm_to_vmem [thread:$0]  %s69, 96, %s71, [#allocation9], 32, 32, 2
    $region21: #{tpu_custom_call.1} parent=1 // pred_fallthru
      _
    // Predicated region
    $region22: #{tpu_custom_call.1} parent=1 // pred_check
      _
    $region23: #{tpu_custom_call.1} parent=1 // pred_check_branch
      %78 = sbr.rel (0) target = $region25
    $region24: #{tpu_custom_call.1} parent=1 // pred_region
      %80 = dma.done [#allocation3], 256
    $region25: #{tpu_custom_call.1} parent=1 // pred_fallthru
      _
    // Predicated region
    $region26: #{tpu_custom_call.1} parent=1 // pred_check
      _
    $region27: #{tpu_custom_call.1} parent=1 // pred_check_branch
      %82 = sbr.rel (0) target = $region29
    $region28: #{tpu_custom_call.1} parent=1 // pred_region
      %84 = dma.done [#allocation6], 2048
    $region29: #{tpu_custom_call.1} parent=1 // pred_fallthru
      _
    // Predicated region
    $region30: #{tpu_custom_call.1} parent=1 // pred_check
      _
    $region31: #{tpu_custom_call.1} parent=1 // pred_check_branch
      %86 = sbr.rel (0) target = $region33
    $region32: #{tpu_custom_call.1} parent=1 // pred_region
      %88 = dma.done [#allocation6], 1024
    $region33: #{tpu_custom_call.1} parent=1 // pred_fallthru
      _
    // Predicated region
    $region34: #{tpu_custom_call.1} parent=1 // pred_check
      _
    $region35: #{tpu_custom_call.1} parent=1 // pred_check_branch
      %90 = sbr.rel (0) target = $region37
    $region36: #{tpu_custom_call.1} parent=1 // pred_region
      %92 = dma.done [#allocation9], 1024
    $region37: #{tpu_custom_call.1} parent=1 // pred_fallthru
      _
    // Predicated region
    $region38: #{tpu_custom_call.1} parent=1 // pred_check
      _
    $region39: #{tpu_custom_call.1} parent=1 // pred_check_branch
      %94 = sbr.rel (0) target = $region41
    $region40: #{tpu_custom_call.1} parent=1 // pred_region
      %96 = dma.done [#allocation9], 96
    $region41: #{tpu_custom_call.1} parent=1 // pred_fallthru
      _
    %v97 = vld [vmem:[#allocation10] sm:$0x3]
    %v98 = vld [vmem:[#allocation10 + $0x2] sm:$0x3]
    %v99 = vld [vmem:[#allocation10 + $0x4] sm:$0x3]
    %v100 = vld [vmem:[#allocation2] sm:$0xff]
    %v101 = vld [vmem:[#allocation2 + $0x8] sm:$0xff]
    %v102 = vunpack.c.0.s8 %v100
    %v103 = vunpack.c.0.s8 %v101
    %v104 = vunpack.c.1.s8 %v100
    %v105 = vunpack.c.1.s8 %v101
    %v106 = vunpack.c.2.s8 %v100
    %v107 = vunpack.c.2.s8 %v101
    %v108 = vunpack.c.3.s8 %v100
    %v109 = vunpack.c.3.s8 %v101
    %v110 = vcvt.s32.f32 %v102
    %v111 = vcvt.s32.f32 %v103
    %v112 = vcvt.s32.f32 %v104
    %v113 = vcvt.s32.f32 %v105
    %v114 = vcvt.s32.f32 %v106
    %v115 = vcvt.s32.f32 %v107
    %v116 = vcvt.s32.f32 %v108
    %v117 = vcvt.s32.f32 %v109
    %v118 = vpack.c.bf16 %v112, %v110
    %v119 = vpack.c.bf16 %v113, %v111
    %v120 = vpack.c.bf16 %v116, %v114
    %v121 = vpack.c.bf16 %v117, %v115
    %v122 = vld [vmem:[#allocation5] sm:$0xf]
    %v123 = vld [vmem:[#allocation5 + $0x4] sm:$0xf]
    %v124 = vld [vmem:[#allocation5 + $0x8] sm:$0xf]
    %v125 = vld [vmem:[#allocation5 + $0xc] sm:$0xf]
    %v126 = vld [vmem:[#allocation5 + $0x10] sm:$0xf]
    %v127 = vld [vmem:[#allocation5 + $0x14] sm:$0xf]
    %v128 = vld [vmem:[#allocation5 + $0x18] sm:$0xf]
    %v129 = vld [vmem:[#allocation5 + $0x1c] sm:$0xf]
    %v130 = vld [vmem:[#allocation5 + $0x20] sm:$0xf]
    %v131 = vld [vmem:[#allocation5 + $0x24] sm:$0xf]
    %v132 = vld [vmem:[#allocation5 + $0x28] sm:$0xf]
    %v133 = vld [vmem:[#allocation5 + $0x2c] sm:$0xf]
    %v134 = vld [vmem:[#allocation5 + $0x30] sm:$0xf]
    %v135 = vld [vmem:[#allocation5 + $0x34] sm:$0xf]
    %v136 = vld [vmem:[#allocation5 + $0x38] sm:$0xf]
    %v137 = vld [vmem:[#allocation5 + $0x3c] sm:$0xf]
    %v138 = vld [vmem:[#allocation5 + $0x40] sm:$0xf]
    %v139 = vld [vmem:[#allocation5 + $0x44] sm:$0xf]
    %v140 = vld [vmem:[#allocation5 + $0x48] sm:$0xf]
    %v141 = vld [vmem:[#allocation5 + $0x4c] sm:$0xf]
    %v142 = vld [vmem:[#allocation5 + $0x50] sm:$0xf]
    %v143 = vld [vmem:[#allocation5 + $0x54] sm:$0xf]
    %v144 = vld [vmem:[#allocation5 + $0x58] sm:$0xf]
    %v145 = vld [vmem:[#allocation5 + $0x5c] sm:$0xf]
    %v146 = vld [vmem:[#allocation5 + $0x60] sm:$0xf]
    %v147 = vld [vmem:[#allocation5 + $0x64] sm:$0xf]
    %v148 = vld [vmem:[#allocation5 + $0x68] sm:$0xf]
    %v149 = vld [vmem:[#allocation5 + $0x6c] sm:$0xf]
    %v150 = vld [vmem:[#allocation5 + $0x70] sm:$0xf]
    %v151 = vld [vmem:[#allocation5 + $0x74] sm:$0xf]
    %v152 = vld [vmem:[#allocation5 + $0x78] sm:$0xf]
    %v153 = vld [vmem:[#allocation5 + $0x7c] sm:$0xf]
    %v186 = vunpack.c.l.b16 %v122
    %v187 = vunpack.c.l.b16 %v123
    %v188 = vunpack.c.l.b16 %v124
    %v189 = vunpack.c.l.b16 %v125
    %v190 = vunpack.c.l.b16 %v126
    %v191 = vunpack.c.l.b16 %v127
    %v192 = vunpack.c.l.b16 %v128
    %v193 = vunpack.c.l.b16 %v129
    %v194 = vunpack.c.l.b16 %v130
    %v195 = vunpack.c.l.b16 %v131
    %v196 = vunpack.c.l.b16 %v132
    %v197 = vunpack.c.l.b16 %v133
    %v198 = vunpack.c.l.b16 %v134
    %v199 = vunpack.c.l.b16 %v135
    %v200 = vunpack.c.l.b16 %v136
    %v201 = vunpack.c.l.b16 %v137
    %v202 = vunpack.c.l.b16 %v138
    %v203 = vunpack.c.l.b16 %v139
    %v204 = vunpack.c.l.b16 %v140
    %v205 = vunpack.c.l.b16 %v141
    %v206 = vunpack.c.l.b16 %v142
    %v207 = vunpack.c.l.b16 %v143
    %v208 = vunpack.c.l.b16 %v144
    %v209 = vunpack.c.l.b16 %v145
    %v210 = vunpack.c.l.b16 %v146
    %v211 = vunpack.c.l.b16 %v147
    %v212 = vunpack.c.l.b16 %v148
    %v213 = vunpack.c.l.b16 %v149
    %v214 = vunpack.c.l.b16 %v150
    %v215 = vunpack.c.l.b16 %v151
    %v216 = vunpack.c.l.b16 %v152
    %v217 = vunpack.c.l.b16 %v153
    %v218 = vpack.c.b16 %v187, %v186
    %v219 = vpack.c.b16 %v189, %v188
    %v220 = vpack.c.b16 %v191, %v190
    %v221 = vpack.c.b16 %v193, %v192
    %v222 = vpack.c.b16 %v195, %v194
    %v223 = vpack.c.b16 %v197, %v196
    %v224 = vpack.c.b16 %v199, %v198
    %v225 = vpack.c.b16 %v201, %v200
    %v226 = vpack.c.b16 %v203, %v202
    %v227 = vpack.c.b16 %v205, %v204
    %v228 = vpack.c.b16 %v207, %v206
    %v229 = vpack.c.b16 %v209, %v208
    %v230 = vpack.c.b16 %v211, %v210
    %v231 = vpack.c.b16 %v213, %v212
    %v232 = vpack.c.b16 %v215, %v214
    %v233 = vpack.c.b16 %v217, %v216
    %250 = vmatpush.bf16.msra.mxu0 %v225
    %251 = vmatpush.bf16.msra.mxu0 %v224
    %252 = vmatpush.bf16.msra.mxu0 %v223
    %253 = vmatpush.bf16.msra.mxu0 %v222
    %254 = vmatpush.bf16.msra.mxu0 %v221
    %255 = vmatpush.bf16.msra.mxu0 %v220
    %256 = vmatpush.bf16.msra.mxu0 %v219
    %257 = vmatpush.bf16.msra.mxu0 %v218
    %258 = vmatmul.bf16.gmra.mxu0 %v118
    %v259 = vpop.f32.mrf.mxu0
    %v260 = vadd.f32 0.0, %v259
    %v261 = vpop.f32.mrf.mxu0
    %v262 = vadd.f32 0.0, %v261
    %263 = vmatmul.bf16.gmra.mxu0 %v120
    %v264 = vpop.f32.mrf.mxu0
    %v265 = vadd.f32 0.0, %v264
    %v266 = vpop.f32.mrf.mxu0
    %v267 = vadd.f32 0.0, %v266
    %268 = vdwg.mxu0
    %269 = vmatpush.bf16.msra.mxu0 %v233
    %270 = vmatpush.bf16.msra.mxu0 %v232
    %271 = vmatpush.bf16.msra.mxu0 %v231
    %272 = vmatpush.bf16.msra.mxu0 %v230
    %273 = vmatpush.bf16.msra.mxu0 %v229
    %274 = vmatpush.bf16.msra.mxu0 %v228
    %275 = vmatpush.bf16.msra.mxu0 %v227
    %276 = vmatpush.bf16.msra.mxu0 %v226
    %277 = vmatmul.bf16.gmra.mxu0 %v119
    %v278 = vpop.f32.mrf.mxu0
    %v279 = vadd.f32 %v260, %v278
    %v280 = vpop.f32.mrf.mxu0
    %v281 = vadd.f32 %v262, %v280
    %282 = vmatmul.bf16.gmra.mxu0 %v121
    %v283 = vpop.f32.mrf.mxu0
    %v284 = vadd.f32 %v265, %v283
    %v285 = vpop.f32.mrf.mxu0
    %v286 = vadd.f32 %v267, %v285
    %287 = vdwg.mxu0
    %v288 = vperm.slane %v97, 0
    %v289 = vmul.f32 %v279, %v288
    %v290 = vmul.f32 %v281, %v288
    %v291 = vmul.f32 %v284, %v288
    %v292 = vmul.f32 %v286, %v288
    %v293 = vperm.slane %v97, 1
    %v294 = vadd.f32 %v289, %v293
    %v295 = vadd.f32 %v290, %v293
    %v296 = vadd.f32 %v291, %v293
    %v297 = vadd.f32 %v292, %v293
    %vm298 = vcmp.ge.f32.partialorder %v294, 0.0
    %vm299 = vcmp.ge.f32.partialorder %v295, 0.0
    %vm300 = vcmp.ge.f32.partialorder %v296, 0.0
    %vm301 = vcmp.ge.f32.partialorder %v297, 0.0
    %v302 = vsel %vm298, 1.0, -1.0
    %v303 = vsel %vm299, 1.0, -1.0
    %v304 = vsel %vm300, 1.0, -1.0
    %v305 = vsel %vm301, 1.0, -1.0
    %v306 = vpack.c.bf16 %v303, %v302
    %v307 = vpack.c.bf16 %v305, %v304
    %v308 = vld [vmem:[#allocation7] sm:$0xf]
    %v309 = vld [vmem:[#allocation7 + $0x4] sm:$0xf]
    %v310 = vld [vmem:[#allocation7 + $0x8] sm:$0xf]
    %v311 = vld [vmem:[#allocation7 + $0xc] sm:$0xf]
    %v312 = vld [vmem:[#allocation7 + $0x10] sm:$0xf]
    %v313 = vld [vmem:[#allocation7 + $0x14] sm:$0xf]
    %v314 = vld [vmem:[#allocation7 + $0x18] sm:$0xf]
    %v315 = vld [vmem:[#allocation7 + $0x1c] sm:$0xf]
    %v316 = vld [vmem:[#allocation7 + $0x20] sm:$0xf]
    %v317 = vld [vmem:[#allocation7 + $0x24] sm:$0xf]
    %v318 = vld [vmem:[#allocation7 + $0x28] sm:$0xf]
    %v319 = vld [vmem:[#allocation7 + $0x2c] sm:$0xf]
    %v320 = vld [vmem:[#allocation7 + $0x30] sm:$0xf]
    %v321 = vld [vmem:[#allocation7 + $0x34] sm:$0xf]
    %v322 = vld [vmem:[#allocation7 + $0x38] sm:$0xf]
    %v323 = vld [vmem:[#allocation7 + $0x3c] sm:$0xf]
    %v340 = vunpack.c.l.b16 %v308
    %v341 = vunpack.c.l.b16 %v309
    %v342 = vunpack.c.l.b16 %v310
    %v343 = vunpack.c.l.b16 %v311
    %v344 = vunpack.c.l.b16 %v312
    %v345 = vunpack.c.l.b16 %v313
    %v346 = vunpack.c.l.b16 %v314
    %v347 = vunpack.c.l.b16 %v315
    %v348 = vunpack.c.l.b16 %v316
    %v349 = vunpack.c.l.b16 %v317
    %v350 = vunpack.c.l.b16 %v318
    %v351 = vunpack.c.l.b16 %v319
    %v352 = vunpack.c.l.b16 %v320
    %v353 = vunpack.c.l.b16 %v321
    %v354 = vunpack.c.l.b16 %v322
    %v355 = vunpack.c.l.b16 %v323
    %v356 = vpack.c.b16 %v341, %v340
    %v357 = vpack.c.b16 %v343, %v342
    %v358 = vpack.c.b16 %v345, %v344
    %v359 = vpack.c.b16 %v347, %v346
    %v360 = vpack.c.b16 %v349, %v348
    %v361 = vpack.c.b16 %v351, %v350
    %v362 = vpack.c.b16 %v353, %v352
    %v363 = vpack.c.b16 %v355, %v354
    %372 = vmatpush.bf16.msra.mxu0 %v363
    %373 = vmatpush.bf16.msra.mxu0 %v362
    %374 = vmatpush.bf16.msra.mxu0 %v361
    %375 = vmatpush.bf16.msra.mxu0 %v360
    %376 = vmatpush.bf16.msra.mxu0 %v359
    %377 = vmatpush.bf16.msra.mxu0 %v358
    %378 = vmatpush.bf16.msra.mxu0 %v357
    %379 = vmatpush.bf16.msra.mxu0 %v356
    %380 = vmatmul.bf16.gmra.mxu0 %v306
    %v381 = vpop.f32.mrf.mxu0
    %v382 = vadd.f32 0.0, %v381
    %v383 = vpop.f32.mrf.mxu0
    %v384 = vadd.f32 0.0, %v383
    %385 = vmatmul.bf16.gmra.mxu0 %v307
    %v386 = vpop.f32.mrf.mxu0
    %v387 = vadd.f32 0.0, %v386
    %v388 = vpop.f32.mrf.mxu0
    %v389 = vadd.f32 0.0, %v388
    %390 = vdwg.mxu0
    %v391 = vperm.slane %v98, 0
    %v392 = vmul.f32 %v382, %v391
    %v393 = vmul.f32 %v384, %v391
    %v394 = vmul.f32 %v387, %v391
    %v395 = vmul.f32 %v389, %v391
    %v396 = vperm.slane %v98, 1
    %v397 = vadd.f32 %v392, %v396
    %v398 = vadd.f32 %v393, %v396
    %v399 = vadd.f32 %v394, %v396
    %v400 = vadd.f32 %v395, %v396
    %vm401 = vcmp.ge.f32.partialorder %v397, 0.0
    %vm402 = vcmp.ge.f32.partialorder %v398, 0.0
    %vm403 = vcmp.ge.f32.partialorder %v399, 0.0
    %vm404 = vcmp.ge.f32.partialorder %v400, 0.0
    %v405 = vsel %vm401, 1.0, -1.0
    %v406 = vsel %vm402, 1.0, -1.0
    %v407 = vsel %vm403, 1.0, -1.0
    %v408 = vsel %vm404, 1.0, -1.0
    %v409 = vpack.c.bf16 %v406, %v405
    %v410 = vpack.c.bf16 %v408, %v407
    %v411 = vld [vmem:[#allocation8] sm:$0xf]
    %v412 = vld [vmem:[#allocation8 + $0x4] sm:$0xf]
    %v413 = vld [vmem:[#allocation8 + $0x8] sm:$0xf]
    %v414 = vld [vmem:[#allocation8 + $0xc] sm:$0xf]
    %v415 = vld [vmem:[#allocation8 + $0x10] sm:$0xf]
    %v416 = vld [vmem:[#allocation8 + $0x14] sm:$0xf]
    %v417 = vld [vmem:[#allocation8 + $0x18] sm:$0xf]
    %v418 = vld [vmem:[#allocation8 + $0x1c] sm:$0xf]
    %v419 = vld [vmem:[#allocation8 + $0x20] sm:$0xf]
    %v420 = vld [vmem:[#allocation8 + $0x24] sm:$0xf]
    %v421 = vld [vmem:[#allocation8 + $0x28] sm:$0xf]
    %v422 = vld [vmem:[#allocation8 + $0x2c] sm:$0xf]
    %v423 = vld [vmem:[#allocation8 + $0x30] sm:$0xf]
    %v424 = vld [vmem:[#allocation8 + $0x34] sm:$0xf]
    %v425 = vld [vmem:[#allocation8 + $0x38] sm:$0xf]
    %v426 = vld [vmem:[#allocation8 + $0x3c] sm:$0xf]
    %v443 = vunpack.c.l.b16 %v411
    %v444 = vunpack.c.l.b16 %v412
    %v445 = vunpack.c.l.b16 %v413
    %v446 = vunpack.c.l.b16 %v414
    %v447 = vunpack.c.l.b16 %v415
    %v448 = vunpack.c.l.b16 %v416
    %v449 = vunpack.c.l.b16 %v417
    %v450 = vunpack.c.l.b16 %v418
    %v451 = vunpack.c.l.b16 %v419
    %v452 = vunpack.c.l.b16 %v420
    %v453 = vunpack.c.l.b16 %v421
    %v454 = vunpack.c.l.b16 %v422
    %v455 = vunpack.c.l.b16 %v423
    %v456 = vunpack.c.l.b16 %v424
    %v457 = vunpack.c.l.b16 %v425
    %v458 = vunpack.c.l.b16 %v426
    %v459 = vpack.c.b16 %v444, %v443
    %v460 = vpack.c.b16 %v446, %v445
    %v461 = vpack.c.b16 %v448, %v447
    %v462 = vpack.c.b16 %v450, %v449
    %v463 = vpack.c.b16 %v452, %v451
    %v464 = vpack.c.b16 %v454, %v453
    %v465 = vpack.c.b16 %v456, %v455
    %v466 = vpack.c.b16 %v458, %v457
    %475 = vmatpush.bf16.msra.mxu0 %v466
    %476 = vmatpush.bf16.msra.mxu0 %v465
    %477 = vmatpush.bf16.msra.mxu0 %v464
    %478 = vmatpush.bf16.msra.mxu0 %v463
    %479 = vmatpush.bf16.msra.mxu0 %v462
    %480 = vmatpush.bf16.msra.mxu0 %v461
    %481 = vmatpush.bf16.msra.mxu0 %v460
    %482 = vmatpush.bf16.msra.mxu0 %v459
    %483 = vmatmul.bf16.gmra.mxu0 %v409
    %v484 = vpop.f32.mrf.mxu0
    %v485 = vadd.f32 0.0, %v484
    %v486 = vpop.f32.mrf.mxu0
    %v487 = vadd.f32 0.0, %v486
    %488 = vmatmul.bf16.gmra.mxu0 %v410
    %v489 = vpop.f32.mrf.mxu0
    %v490 = vadd.f32 0.0, %v489
    %v491 = vpop.f32.mrf.mxu0
    %v492 = vadd.f32 0.0, %v491
    %493 = vdwg.mxu0
    %v494 = vperm.slane %v99, 0
    %v495 = vmul.f32 %v485, %v494
    %v496 = vmul.f32 %v487, %v494
    %v497 = vmul.f32 %v490, %v494
    %v498 = vmul.f32 %v492, %v494
    %v499 = vperm.slane %v99, 1
    %v500 = vadd.f32 %v495, %v499
    %v501 = vadd.f32 %v496, %v499
    %v502 = vadd.f32 %v497, %v499
    %v503 = vadd.f32 %v498, %v499
    %v504 = vpack.c.bf16 %v500, %v500
    %v505 = vpack.c.bf16 %v501, %v501
    %v506 = vpack.c.bf16 %v502, %v502
    %v507 = vpack.c.bf16 %v503, %v503
    %508 = vst [vmem:[#allocation11] sm:$0xf] %v504
    %509 = vst [vmem:[#allocation11 + $0x4] sm:$0xf] %v505
    %510 = vst [vmem:[#allocation11 + $0x8] sm:$0xf] %v506
    %511 = vst [vmem:[#allocation11 + $0xc] sm:$0xf] %v507
    // Predicated region
    $region42: #{tpu_custom_call.1} parent=1 // pred_check
      _
    $region43: #{tpu_custom_call.1} parent=1 // pred_check_branch
      %513 = sbr.rel (0) target = $region45
    $region44: #{tpu_custom_call.1} parent=1 // pred_region
      %515 = vsyncadd [#allocation4], 0
      %s516 = sshll.u32 [#allocation11], 4
      %s517 = int_to_ptr.vmem [resolvable:$true] %s516
      %s518 = sshll.u32 %s5, 4
      %s519 = int_to_ptr.hbm [resolvable:$true] %s518
      %524 = dma.vmem_to_hbm [thread:$0]  %s517, 256, %s519, [#allocation4], 64, 64, 4
    $region45: #{tpu_custom_call.1} parent=1 // pred_fallthru
      _
    // Predicated region
    $region46: #{tpu_custom_call.1} parent=1 // pred_check
      _
    $region47: #{tpu_custom_call.1} parent=1 // pred_check_branch
      %526 = sbr.rel (0) target = $region49
    $region48: #{tpu_custom_call.1} parent=1 // pred_region
      %528 = dma.done [#allocation4], 256
    $region49: #{tpu_custom_call.1} parent=1 // pred_fallthru
      _
    %529 = vsyncpa [#allocation3], 1
    %530 = vsyncpa [#allocation6], 1
    %531 = vsyncpa [#allocation9], 1
    %532 = vsyncpa [#allocation4], 1

</llo_original>
